<compile_context>
chip_gen: v5e
topology: v5e:2x2
jax: 0.10.0
libtpu: 0.0.40
codegen_flags: <defaults>
</compile_context>

<pallas_src>
import jax
import jax.numpy as jnp
from jax import lax
from jax.experimental import pallas as pl
from jax.experimental.pallas import tpu as pltpu

LANE = 128  # pad the class dimension up to a lane-dense multiple of this


def _linear_kernel(x_ref, w_ref, b_ref, o_ref):
    """Single-shot linear layer for one batch tile.

    x_ref: (tm, D)     bf16 flattened input tile
    w_ref: (Cpad, D)   bf16 weight, PyTorch layout (resident across grid)
    b_ref: (1, Cpad)   f32 bias (resident across grid)
    o_ref: (tm, Cpad)  f32 logits tile (lane-dense)
    """
    acc = lax.dot_general(
        x_ref[...],
        w_ref[...],
        dimension_numbers=(((1,), (1,)), ((), ())),  # contract D vs D (RHS transposed "for free")
        preferred_element_type=jnp.float32,
    )
    o_ref[...] = acc + b_ref[...]


def linear_classifier_forward(x, weight, bias, *, tm=512):
    """Forward pass of LinearClassifier.

    Args:
        x:      (b, 3, H, W) float32 image, NCHW
        weight: (num_classes, 3*H*W) float32  (PyTorch nn.Linear layout)
        bias:   (num_classes,) float32
        tm:     batch tile size used when b > tm (kept modest for v7x's 64 MiB VMEM)

    Returns:
        (b, num_classes) float32 logits
    """
    b = x.shape[0]
    num_classes, D = weight.shape

    # Glue: flatten (C, H, W) row-major (matches nn.Flatten on NCHW) and cast to bf16.
    x_flat = x.reshape(b, D).astype(jnp.bfloat16)

    # Lane-dense padding of the class dimension (6 -> 128). Zero columns are exact.
    c_pad = max(LANE, pl.cdiv(num_classes, LANE) * LANE)
    w_p = jnp.zeros((c_pad, D), jnp.bfloat16).at[:num_classes].set(
        weight.astype(jnp.bfloat16)
    )
    b_p = jnp.zeros((1, c_pad), jnp.float32).at[0, :num_classes].set(
        bias.astype(jnp.float32)
    )

    # Batch (M) tiling: single grid step for small b; tile + pad for large b.
    if b <= tm:
        tm_eff, b_pad = b, b
    else:
        tm_eff = tm
        b_pad = pl.cdiv(b, tm_eff) * tm_eff
        if b_pad != b:
            x_flat = jnp.pad(x_flat, ((0, b_pad - b), (0, 0)))
    grid_m = b_pad // tm_eff

    out = pl.pallas_call(
        _linear_kernel,
        out_shape=jax.ShapeDtypeStruct((b_pad, c_pad), jnp.float32),
        grid_spec=pltpu.PrefetchScalarGridSpec(
            num_scalar_prefetch=0,
            grid=(grid_m,),
            in_specs=[
                pl.BlockSpec((tm_eff, D), lambda m: (m, 0)),   # stream x over batch
                pl.BlockSpec((c_pad, D), lambda m: (0, 0)),    # weight resident
                pl.BlockSpec((1, c_pad), lambda m: (0, 0)),    # bias resident
            ],
            out_specs=pl.BlockSpec((tm_eff, c_pad), lambda m: (m, 0)),
        ),
        compiler_params=pltpu.CompilerParams(
            dimension_semantics=("parallel",),
        ),
    )(x_flat, w_p, b_p)

    # Strip batch + class padding.
    return out[:b, :num_classes]


if __name__ == "__main__":
    # Small shapes consistent with the module: H = W = 16, num_classes = 6.
    B, H, W, NUM_CLASSES = 2, 16, 16, 6
    D = 3 * H * W  # 768

    key = jax.random.PRNGKey(0)
    kx, kw, kb = jax.random.split(key, 3)

    x = jax.random.normal(kx, (B, 3, H, W), dtype=jnp.float32)
    # Deterministic synthetic parameters (nn.Linear-like scale).
    bound = 1.0 / (D ** 0.5)
    weight = jax.random.uniform(kw, (NUM_CLASSES, D), jnp.float32, -bound, bound)
    bias = jax.random.uniform(kb, (NUM_CLASSES,), jnp.float32, -bound, bound)

    logits = linear_classifier_forward(x, weight, bias)
    logits = jax.block_until_ready(logits)

    # Pure-JAX f32 reference (kernel computes in bf16 with f32 accumulation).
    ref = x.reshape(B, D) @ weight.T + bias
    assert logits.shape == (B, NUM_CLASSES)
    assert jnp.allclose(logits, ref, atol=2e-2, rtol=2e-2), (
        jnp.max(jnp.abs(logits - ref))
    )

    print("KERNEL_OK")
</pallas_src>

<mosaic_0001>
module attributes {stable_mosaic.version = 11 : i64} {
  func.func @_linear_kernel(%arg0: i32, %arg1: memref<2x768xbf16, #tpu.memory_space<vmem>>, %arg2: memref<128x768xbf16, #tpu.memory_space<vmem>>, %arg3: memref<1x128xf32, #tpu.memory_space<vmem>>, %arg4: memref<2x128xf32, #tpu.memory_space<vmem>>) attributes {dimension_semantics = [#tpu.dimension_semantics<parallel>], iteration_bounds = array<i64: 1>, scalar_prefetch = 0 : i64, scratch_operands = 0 : i64, tpu.core_type = #tpu.core_type<tc>, window_params = [{transform_indices = @transform_0, window_bounds = array<i64: 2, 768>}, {pipeline_mode = #tpu.pipeline_mode<synchronous>, transform_indices = @transform_1, window_bounds = array<i64: 128, 768>}, {pipeline_mode = #tpu.pipeline_mode<synchronous>, transform_indices = @transform_2, window_bounds = array<i64: 1, 128>}, {transform_indices = @transform_3, window_bounds = array<i64: 2, 128>}]} {
    %c0 = arith.constant 0 : index
    %c0_0 = arith.constant 0 : index
    %0 = vector.load %arg1[%c0, %c0_0] : memref<2x768xbf16, #tpu.memory_space<vmem>>, vector<2x768xbf16>
    %c0_1 = arith.constant 0 : index
    %c0_2 = arith.constant 0 : index
    %1 = vector.load %arg2[%c0_1, %c0_2] : memref<128x768xbf16, #tpu.memory_space<vmem>>, vector<128x768xbf16>
    %cst = arith.constant dense<0.000000e+00> : vector<2x128xf32>
    %2 = tpu.matmul %0, %1, %cst {dimension_numbers = #tpu.dot_dimension_numbers<[1], [1], [0], [0], [0, 0, 1, 0], [], []>} : vector<2x768xbf16>, vector<128x768xbf16>, vector<2x128xf32> -> vector<2x128xf32>
    %c0_3 = arith.constant 0 : index
    %c0_4 = arith.constant 0 : index
    %3 = vector.load %arg3[%c0_3, %c0_4] : memref<1x128xf32, #tpu.memory_space<vmem>>, vector<1x128xf32>
    %4 = vector.broadcast %3 : vector<1x128xf32> to vector<2x128xf32>
    %5 = arith.addf %2, %4 : vector<2x128xf32>
    %c0_5 = arith.constant 0 : index
    %c0_6 = arith.constant 0 : index
    %6 = vector.load %arg4[%c0_5, %c0_6] : memref<2x128xf32, #tpu.memory_space<vmem>>, vector<2x128xf32>
    tpu.vector_store %arg4[%c0_5, %c0_6], %5 {strides = array<i32>} : memref<2x128xf32, #tpu.memory_space<vmem>>, vector<2x128xf32>,
    return
  }
  func.func @transform_0(%arg0: i32) -> (i32, i32) {
    %c0_i32 = arith.constant 0 : i32
    %c0_i32_0 = arith.constant 0 : i32
    return %arg0, %c0_i32 : i32, i32
  }
  func.func @transform_1(%arg0: i32) -> (i32, i32) {
    %c0_i32 = arith.constant 0 : i32
    %c0_i32_0 = arith.constant 0 : i32
    %c0_i32_1 = arith.constant 0 : i32
    return %c0_i32, %c0_i32_0 : i32, i32
  }
  func.func @transform_2(%arg0: i32) -> (i32, i32) {
    %c0_i32 = arith.constant 0 : i32
    %c0_i32_0 = arith.constant 0 : i32
    %c0_i32_1 = arith.constant 0 : i32
    return %c0_i32, %c0_i32_0 : i32, i32
  }
  func.func @transform_3(%arg0: i32) -> (i32, i32) {
    %c0_i32 = arith.constant 0 : i32
    %c0_i32_0 = arith.constant 0 : i32
    return %arg0, %c0_i32 : i32, i32
  }
}

</mosaic_0001>

<llo_original>
// kernel: tpu_custom_call.1
$region0: #{tpu_custom_call.1}
  #allocation0 [shape = 'u32[]', space=smem, size = 0x4, offset = 0x4, fixed_abs, tag = 'smem constant byte address 0x4 - core index']
  #allocation1 [shape = 'u32[72,128]{1,0:T(1,128)}', space=vmem, size = 0x9000, scoped, tag = 'internal scratch']
  %s0 = inlined_call_operand.hbm [shape: bf16[2,768], index: 0, kind: input, shape index: {}]
  %s1 = inlined_call_operand.hbm [shape: bf16[128,768], index: 1, kind: input, shape index: {}]
  %s2 = inlined_call_operand.vmem [shape: f32[1,128], index: 2, kind: input, shape index: {}]
  %s3 = inlined_call_operand.hbm [shape: f32[2,128], index: 3, kind: output, shape index: {}]
  %s4 = sld [smem:[#allocation0]]
  $region30: #{tpu_custom_call.1} parent=0
    _
  %s6 = ssub.s32 1, %s4
  %s7 = scalar_select 0, %s6, %s4
  $region1: #{tpu_custom_call.1} parent=0
    #allocation2 [shape = 'u8[3072]{0}', space=vmem, size = 0xc00, scoped, tag = 'input window, operand 0, single buffered']
    #allocation3 [shape = 's32[1]{0}', space=sflag, size = 0x4, scoped, tag = 'scoped memory for tpu_custom_call.1']
    #allocation4 [shape = 's32[1]{0}', space=sflag, size = 0x4, scoped, tag = 'scoped memory for tpu_custom_call.1']
    #allocation5 [shape = 'u8[196608]{0}', space=vmem, size = 0x30000, scoped, tag = 'input window, operand 1, single buffered']
    #allocation6 [shape = 's32[1]{0}', space=sflag, size = 0x4, scoped, tag = 'scoped memory for tpu_custom_call.1']
    #allocation7 [shape = 'u8[1024]{0}', space=vmem, size = 0x400, scoped, tag = 'output window, operand 0, single buffered']
    %8 = vsyncpa [#allocation3], 0
    %9 = vsyncpa [#allocation6], 0
    %10 = vsyncpa [#allocation4], 0
    // Predicated region
    $region2: #{tpu_custom_call.1} parent=1 // pred_check
      _
    $region3: #{tpu_custom_call.1} parent=1 // pred_check_branch
      %12 = sbr.rel (0) target = $region5
    $region4: #{tpu_custom_call.1} parent=1 // pred_region
      %14 = vsyncadd [#allocation3], 0
      %s16 = sshll.u32 %s0, 4
      %s17 = int_to_ptr.hbm [resolvable:$true] %s16
      %s18 = sshll.u32 [#allocation2], 4
      %s19 = int_to_ptr.vmem [resolvable:$true] %s18
      %21 = dma.hbm_to_vmem [thread:$0]  %s17, 96, %s19, [#allocation3]
    $region5: #{tpu_custom_call.1} parent=1 // pred_fallthru
      _
    // Predicated region
    $region6: #{tpu_custom_call.1} parent=1 // pred_check
      _
    $region7: #{tpu_custom_call.1} parent=1 // pred_check_branch
      %23 = sbr.rel (0) target = $region9
    $region8: #{tpu_custom_call.1} parent=1 // pred_region
      %25 = vsyncadd [#allocation6], 0
      %s26 = sshll.u32 %s1, 4
      %s27 = int_to_ptr.hbm [resolvable:$true] %s26
      %s28 = sshll.u32 [#allocation5], 4
      %s29 = int_to_ptr.vmem [resolvable:$true] %s28
      %34 = dma.hbm_to_vmem [thread:$0]  %s27, 6144, %s29, [#allocation6], 384, 384, 24
    $region9: #{tpu_custom_call.1} parent=1 // pred_fallthru
      _
    // Predicated region
    $region10: #{tpu_custom_call.1} parent=1 // pred_check
      _
    $region11: #{tpu_custom_call.1} parent=1 // pred_check_branch
      %36 = sbr.rel (0) target = $region13
    $region12: #{tpu_custom_call.1} parent=1 // pred_region
      _
    $region13: #{tpu_custom_call.1} parent=1 // pred_fallthru
      _
    // Predicated region
    $region14: #{tpu_custom_call.1} parent=1 // pred_check
      _
    $region15: #{tpu_custom_call.1} parent=1 // pred_check_branch
      %38 = sbr.rel (0) target = $region17
    $region16: #{tpu_custom_call.1} parent=1 // pred_region
      %40 = dma.done [#allocation3], 96
    $region17: #{tpu_custom_call.1} parent=1 // pred_fallthru
      _
    // Predicated region
    $region18: #{tpu_custom_call.1} parent=1 // pred_check
      _
    $region19: #{tpu_custom_call.1} parent=1 // pred_check_branch
      %42 = sbr.rel (0) target = $region21
    $region20: #{tpu_custom_call.1} parent=1 // pred_region
      %44 = dma.done [#allocation6], 6144
    $region21: #{tpu_custom_call.1} parent=1 // pred_fallthru
      _
    %v45 = vld [vmem:[#allocation2] sm:$0x3f]
    %v46 = vld [vmem:[#allocation5] sm:$0xff]
    %v47 = vld [vmem:[#allocation5 + $0x8] sm:$0xff]
    %v48 = vld [vmem:[#allocation5 + $0x10] sm:$0xff]
    %v49 = vld [vmem:[#allocation5 + $0x18] sm:$0xff]
    %v50 = vld [vmem:[#allocation5 + $0x20] sm:$0xff]
    %v51 = vld [vmem:[#allocation5 + $0x28] sm:$0xff]
    %v52 = vld [vmem:[#allocation5 + $0x30] sm:$0xff]
    %v53 = vld [vmem:[#allocation5 + $0x38] sm:$0xff]
    %v54 = vld [vmem:[#allocation5 + $0x40] sm:$0xff]
    %v55 = vld [vmem:[#allocation5 + $0x48] sm:$0xff]
    %v56 = vld [vmem:[#allocation5 + $0x50] sm:$0xff]
    %v57 = vld [vmem:[#allocation5 + $0x58] sm:$0xff]
    %v58 = vld [vmem:[#allocation5 + $0x60] sm:$0xff]
    %v59 = vld [vmem:[#allocation5 + $0x68] sm:$0xff]
    %v60 = vld [vmem:[#allocation5 + $0x70] sm:$0xff]
    %v61 = vld [vmem:[#allocation5 + $0x78] sm:$0xff]
    %v62 = vld [vmem:[#allocation5 + $0x80] sm:$0xff]
    %v63 = vld [vmem:[#allocation5 + $0x88] sm:$0xff]
    %v64 = vld [vmem:[#allocation5 + $0x90] sm:$0xff]
    %v65 = vld [vmem:[#allocation5 + $0x98] sm:$0xff]
    %v66 = vld [vmem:[#allocation5 + $0xa0] sm:$0xff]
    %v67 = vld [vmem:[#allocation5 + $0xa8] sm:$0xff]
    %v68 = vld [vmem:[#allocation5 + $0xb0] sm:$0xff]
    %v69 = vld [vmem:[#allocation5 + $0xb8] sm:$0xff]
    %v70 = vld [vmem:[#allocation5 + $0xc0] sm:$0xff]
    %v71 = vld [vmem:[#allocation5 + $0xc8] sm:$0xff]
    %v72 = vld [vmem:[#allocation5 + $0xd0] sm:$0xff]
    %v73 = vld [vmem:[#allocation5 + $0xd8] sm:$0xff]
    %v74 = vld [vmem:[#allocation5 + $0xe0] sm:$0xff]
    %v75 = vld [vmem:[#allocation5 + $0xe8] sm:$0xff]
    %v76 = vld [vmem:[#allocation5 + $0xf0] sm:$0xff]
    %v77 = vld [vmem:[#allocation5 + $0xf8] sm:$0xff]
    %v78 = vld [vmem:[#allocation5 + $0x100] sm:$0xff]
    %v79 = vld [vmem:[#allocation5 + $0x108] sm:$0xff]
    %v80 = vld [vmem:[#allocation5 + $0x110] sm:$0xff]
    %v81 = vld [vmem:[#allocation5 + $0x118] sm:$0xff]
    %v82 = vld [vmem:[#allocation5 + $0x120] sm:$0xff]
    %v83 = vld [vmem:[#allocation5 + $0x128] sm:$0xff]
    %v84 = vld [vmem:[#allocation5 + $0x130] sm:$0xff]
    %v85 = vld [vmem:[#allocation5 + $0x138] sm:$0xff]
    %v86 = vld [vmem:[#allocation5 + $0x140] sm:$0xff]
    %v87 = vld [vmem:[#allocation5 + $0x148] sm:$0xff]
    %v88 = vld [vmem:[#allocation5 + $0x150] sm:$0xff]
    %v89 = vld [vmem:[#allocation5 + $0x158] sm:$0xff]
    %v90 = vld [vmem:[#allocation5 + $0x160] sm:$0xff]
    %v91 = vld [vmem:[#allocation5 + $0x168] sm:$0xff]
    %v92 = vld [vmem:[#allocation5 + $0x170] sm:$0xff]
    %v93 = vld [vmem:[#allocation5 + $0x178] sm:$0xff]
    %v94 = vld [vmem:[%s2] sm:$0x1]
    %v96 = vperm.slane %v94, 0
    %99 = vst [vmem:[#allocation1] ss:$9 sm:$0xff] %v45
    %v100 = vld [vmem:[#allocation1] sm:$0xff]
    %v101 = vld [vmem:[#allocation1 + $0x9] sm:$0xff]
    %v102 = vld [vmem:[#allocation1 + $0x12] sm:$0xff]
    %v103 = vld [vmem:[#allocation1 + $0x1b] sm:$0xff]
    %v104 = vld [vmem:[#allocation1 + $0x24] sm:$0xff]
    %v105 = vld [vmem:[#allocation1 + $0x2d] sm:$0xff]
    %v160 = vunpack.c.l.b16 %v46
    %v161 = vunpack.c.h.b16 %v46
    %v162 = vunpack.c.l.b16 %v47
    %v163 = vunpack.c.h.b16 %v47
    %v164 = vunpack.c.l.b16 %v48
    %v165 = vunpack.c.h.b16 %v48
    %v166 = vunpack.c.l.b16 %v49
    %v167 = vunpack.c.h.b16 %v49
    %v168 = vunpack.c.l.b16 %v50
    %v169 = vunpack.c.h.b16 %v50
    %v170 = vunpack.c.l.b16 %v51
    %v171 = vunpack.c.h.b16 %v51
    %v172 = vunpack.c.l.b16 %v52
    %v173 = vunpack.c.h.b16 %v52
    %v174 = vunpack.c.l.b16 %v53
    %v175 = vunpack.c.h.b16 %v53
    %v176 = vunpack.c.l.b16 %v54
    %v177 = vunpack.c.h.b16 %v54
    %v178 = vunpack.c.l.b16 %v55
    %v179 = vunpack.c.h.b16 %v55
    %v180 = vunpack.c.l.b16 %v56
    %v181 = vunpack.c.h.b16 %v56
    %v182 = vunpack.c.l.b16 %v57
    %v183 = vunpack.c.h.b16 %v57
    %v184 = vunpack.c.l.b16 %v58
    %v185 = vunpack.c.h.b16 %v58
    %v186 = vunpack.c.l.b16 %v59
    %v187 = vunpack.c.h.b16 %v59
    %v188 = vunpack.c.l.b16 %v60
    %v189 = vunpack.c.h.b16 %v60
    %v190 = vunpack.c.l.b16 %v61
    %v191 = vunpack.c.h.b16 %v61
    %v192 = vunpack.c.l.b16 %v62
    %v193 = vunpack.c.h.b16 %v62
    %v194 = vunpack.c.l.b16 %v63
    %v195 = vunpack.c.h.b16 %v63
    %v196 = vunpack.c.l.b16 %v64
    %v197 = vunpack.c.h.b16 %v64
    %v198 = vunpack.c.l.b16 %v65
    %v199 = vunpack.c.h.b16 %v65
    %v200 = vunpack.c.l.b16 %v66
    %v201 = vunpack.c.h.b16 %v66
    %v202 = vunpack.c.l.b16 %v67
    %v203 = vunpack.c.h.b16 %v67
    %v204 = vunpack.c.l.b16 %v68
    %v205 = vunpack.c.h.b16 %v68
    %v206 = vunpack.c.l.b16 %v69
    %v207 = vunpack.c.h.b16 %v69
    %v208 = vunpack.c.l.b16 %v70
    %v209 = vunpack.c.h.b16 %v70
    %v210 = vunpack.c.l.b16 %v71
    %v211 = vunpack.c.h.b16 %v71
    %v212 = vunpack.c.l.b16 %v72
    %v213 = vunpack.c.h.b16 %v72
    %v214 = vunpack.c.l.b16 %v73
    %v215 = vunpack.c.h.b16 %v73
    %v216 = vunpack.c.l.b16 %v74
    %v217 = vunpack.c.h.b16 %v74
    %v218 = vunpack.c.l.b16 %v75
    %v219 = vunpack.c.h.b16 %v75
    %v220 = vunpack.c.l.b16 %v76
    %v221 = vunpack.c.h.b16 %v76
    %v222 = vunpack.c.l.b16 %v77
    %v223 = vunpack.c.h.b16 %v77
    %v224 = vunpack.c.l.b16 %v78
    %v225 = vunpack.c.h.b16 %v78
    %v226 = vunpack.c.l.b16 %v79
    %v227 = vunpack.c.h.b16 %v79
    %v228 = vunpack.c.l.b16 %v80
    %v229 = vunpack.c.h.b16 %v80
    %v230 = vunpack.c.l.b16 %v81
    %v231 = vunpack.c.h.b16 %v81
    %v232 = vunpack.c.l.b16 %v82
    %v233 = vunpack.c.h.b16 %v82
    %v234 = vunpack.c.l.b16 %v83
    %v235 = vunpack.c.h.b16 %v83
    %v236 = vunpack.c.l.b16 %v84
    %v237 = vunpack.c.h.b16 %v84
    %v238 = vunpack.c.l.b16 %v85
    %v239 = vunpack.c.h.b16 %v85
    %v240 = vunpack.c.l.b16 %v86
    %v241 = vunpack.c.h.b16 %v86
    %v242 = vunpack.c.l.b16 %v87
    %v243 = vunpack.c.h.b16 %v87
    %v244 = vunpack.c.l.b16 %v88
    %v245 = vunpack.c.h.b16 %v88
    %v246 = vunpack.c.l.b16 %v89
    %v247 = vunpack.c.h.b16 %v89
    %v248 = vunpack.c.l.b16 %v90
    %v249 = vunpack.c.h.b16 %v90
    %v250 = vunpack.c.l.b16 %v91
    %v251 = vunpack.c.h.b16 %v91
    %v252 = vunpack.c.l.b16 %v92
    %v253 = vunpack.c.h.b16 %v92
    %v254 = vunpack.c.l.b16 %v93
    %v255 = vunpack.c.h.b16 %v93
    %v256 = vpack.c.b16 %v166, %v160
    %v257 = vpack.c.b16 %v167, %v161
    %v258 = vpack.c.b16 %v168, %v162
    %v259 = vpack.c.b16 %v169, %v163
    %v260 = vpack.c.b16 %v170, %v164
    %v261 = vpack.c.b16 %v171, %v165
    %v262 = vpack.c.b16 %v178, %v172
    %v263 = vpack.c.b16 %v179, %v173
    %v264 = vpack.c.b16 %v180, %v174
    %v265 = vpack.c.b16 %v181, %v175
    %v266 = vpack.c.b16 %v182, %v176
    %v267 = vpack.c.b16 %v183, %v177
    %v268 = vpack.c.b16 %v190, %v184
    %v269 = vpack.c.b16 %v191, %v185
    %v270 = vpack.c.b16 %v192, %v186
    %v271 = vpack.c.b16 %v193, %v187
    %v272 = vpack.c.b16 %v194, %v188
    %v273 = vpack.c.b16 %v195, %v189
    %v274 = vpack.c.b16 %v202, %v196
    %v275 = vpack.c.b16 %v203, %v197
    %v276 = vpack.c.b16 %v204, %v198
    %v277 = vpack.c.b16 %v205, %v199
    %v278 = vpack.c.b16 %v206, %v200
    %v279 = vpack.c.b16 %v207, %v201
    %v280 = vpack.c.b16 %v214, %v208
    %v281 = vpack.c.b16 %v215, %v209
    %v282 = vpack.c.b16 %v216, %v210
    %v283 = vpack.c.b16 %v217, %v211
    %v284 = vpack.c.b16 %v218, %v212
    %v285 = vpack.c.b16 %v219, %v213
    %v286 = vpack.c.b16 %v226, %v220
    %v287 = vpack.c.b16 %v227, %v221
    %v288 = vpack.c.b16 %v228, %v222
    %v289 = vpack.c.b16 %v229, %v223
    %v290 = vpack.c.b16 %v230, %v224
    %v291 = vpack.c.b16 %v231, %v225
    %v292 = vpack.c.b16 %v238, %v232
    %v293 = vpack.c.b16 %v239, %v233
    %v294 = vpack.c.b16 %v240, %v234
    %v295 = vpack.c.b16 %v241, %v235
    %v296 = vpack.c.b16 %v242, %v236
    %v297 = vpack.c.b16 %v243, %v237
    %v298 = vpack.c.b16 %v250, %v244
    %v299 = vpack.c.b16 %v251, %v245
    %v300 = vpack.c.b16 %v252, %v246
    %v301 = vpack.c.b16 %v253, %v247
    %v302 = vpack.c.b16 %v254, %v248
    %v303 = vpack.c.b16 %v255, %v249
    %352 = vmatpush.bf16.xpose.msra.mxu0 %v298
    %353 = vmatpush.bf16.xpose.msra.mxu0 %v292
    %354 = vmatpush.bf16.xpose.msra.mxu0 %v286
    %355 = vmatpush.bf16.xpose.msra.mxu0 %v280
    %356 = vmatpush.bf16.xpose.msra.mxu0 %v274
    %357 = vmatpush.bf16.xpose.msra.mxu0 %v268
    %358 = vmatpush.bf16.xpose.msra.mxu0 %v262
    %359 = vmatpush.bf16.xpose.msra.mxu0 %v256
    %360 = vmatmul.bf16.gmra.mxu0 %v100
    %v361 = vpop.f32.mrf.mxu0
    %v362 = vadd.f32 %v96, %v361
    %v363 = vpop.f32.mrf.mxu0
    %364 = vdwg.mxu0
    %365 = vmatpush.bf16.xpose.msra.mxu0 %v299
    %366 = vmatpush.bf16.xpose.msra.mxu0 %v293
    %367 = vmatpush.bf16.xpose.msra.mxu0 %v287
    %368 = vmatpush.bf16.xpose.msra.mxu0 %v281
    %369 = vmatpush.bf16.xpose.msra.mxu0 %v275
    %370 = vmatpush.bf16.xpose.msra.mxu0 %v269
    %371 = vmatpush.bf16.xpose.msra.mxu0 %v263
    %372 = vmatpush.bf16.xpose.msra.mxu0 %v257
    %373 = vmatmul.bf16.gmra.mxu0 %v101
    %v374 = vpop.f32.mrf.mxu0
    %v375 = vadd.f32 %v362, %v374
    %v376 = vpop.f32.mrf.mxu0
    %377 = vdwg.mxu0
    %378 = vmatpush.bf16.xpose.msra.mxu0 %v300
    %379 = vmatpush.bf16.xpose.msra.mxu0 %v294
    %380 = vmatpush.bf16.xpose.msra.mxu0 %v288
    %381 = vmatpush.bf16.xpose.msra.mxu0 %v282
    %382 = vmatpush.bf16.xpose.msra.mxu0 %v276
    %383 = vmatpush.bf16.xpose.msra.mxu0 %v270
    %384 = vmatpush.bf16.xpose.msra.mxu0 %v264
    %385 = vmatpush.bf16.xpose.msra.mxu0 %v258
    %386 = vmatmul.bf16.gmra.mxu0 %v102
    %v387 = vpop.f32.mrf.mxu0
    %v388 = vadd.f32 %v375, %v387
    %v389 = vpop.f32.mrf.mxu0
    %390 = vdwg.mxu0
    %391 = vmatpush.bf16.xpose.msra.mxu0 %v301
    %392 = vmatpush.bf16.xpose.msra.mxu0 %v295
    %393 = vmatpush.bf16.xpose.msra.mxu0 %v289
    %394 = vmatpush.bf16.xpose.msra.mxu0 %v283
    %395 = vmatpush.bf16.xpose.msra.mxu0 %v277
    %396 = vmatpush.bf16.xpose.msra.mxu0 %v271
    %397 = vmatpush.bf16.xpose.msra.mxu0 %v265
    %398 = vmatpush.bf16.xpose.msra.mxu0 %v259
    %399 = vmatmul.bf16.gmra.mxu0 %v103
    %v400 = vpop.f32.mrf.mxu0
    %v401 = vadd.f32 %v388, %v400
    %v402 = vpop.f32.mrf.mxu0
    %403 = vdwg.mxu0
    %404 = vmatpush.bf16.xpose.msra.mxu0 %v302
    %405 = vmatpush.bf16.xpose.msra.mxu0 %v296
    %406 = vmatpush.bf16.xpose.msra.mxu0 %v290
    %407 = vmatpush.bf16.xpose.msra.mxu0 %v284
    %408 = vmatpush.bf16.xpose.msra.mxu0 %v278
    %409 = vmatpush.bf16.xpose.msra.mxu0 %v272
    %410 = vmatpush.bf16.xpose.msra.mxu0 %v266
    %411 = vmatpush.bf16.xpose.msra.mxu0 %v260
    %412 = vmatmul.bf16.gmra.mxu0 %v104
    %v413 = vpop.f32.mrf.mxu0
    %v414 = vadd.f32 %v401, %v413
    %v415 = vpop.f32.mrf.mxu0
    %416 = vdwg.mxu0
    %417 = vmatpush.bf16.xpose.msra.mxu0 %v303
    %418 = vmatpush.bf16.xpose.msra.mxu0 %v297
    %419 = vmatpush.bf16.xpose.msra.mxu0 %v291
    %420 = vmatpush.bf16.xpose.msra.mxu0 %v285
    %421 = vmatpush.bf16.xpose.msra.mxu0 %v279
    %422 = vmatpush.bf16.xpose.msra.mxu0 %v273
    %423 = vmatpush.bf16.xpose.msra.mxu0 %v267
    %424 = vmatpush.bf16.xpose.msra.mxu0 %v261
    %425 = vmatmul.bf16.gmra.mxu0 %v105
    %v426 = vpop.f32.mrf.mxu0
    %v427 = vadd.f32 %v414, %v426
    %v428 = vpop.f32.mrf.mxu0
    %429 = vdwg.mxu0
    %430 = vst [vmem:[#allocation7] sm:$0x3] %v427
    // Predicated region
    $region22: #{tpu_custom_call.1} parent=1 // pred_check
      _
    $region23: #{tpu_custom_call.1} parent=1 // pred_check_branch
      %432 = sbr.rel (0) target = $region25
    $region24: #{tpu_custom_call.1} parent=1 // pred_region
      %434 = vsyncadd [#allocation4], 0
      %s436 = sshll.u32 [#allocation7], 4
      %s437 = int_to_ptr.vmem [resolvable:$true] %s436
      %s438 = sshll.u32 %s3, 4
      %s439 = int_to_ptr.hbm [resolvable:$true] %s438
      %441 = dma.vmem_to_hbm [thread:$0]  %s437, 32, %s439, [#allocation4]
    $region25: #{tpu_custom_call.1} parent=1 // pred_fallthru
      _
    // Predicated region
    $region26: #{tpu_custom_call.1} parent=1 // pred_check
      _
    $region27: #{tpu_custom_call.1} parent=1 // pred_check_branch
      %443 = sbr.rel (0) target = $region29
    $region28: #{tpu_custom_call.1} parent=1 // pred_region
      %445 = dma.done [#allocation4], 32
    $region29: #{tpu_custom_call.1} parent=1 // pred_fallthru
      _
    %446 = vsyncpa [#allocation3], 1
    %447 = vsyncpa [#allocation6], 1
    %448 = vsyncpa [#allocation4], 1

</llo_original>
